<compile_context>
chip_gen: v5e
topology: v5e:2x2
jax: 0.10.0
libtpu: 0.0.40
codegen_flags: <defaults>
</compile_context>

<pallas_src>
import math

import jax
import jax.numpy as jnp
from jax.experimental import pallas as pl
from jax.experimental.pallas import tpu as pltpu


def _make_encoder_kernel(n_pre_hidden, n_post_hidden, has_mask, use_lat):
    """Fused pre-MLP -> pooling -> post-MLP kernel for one batch tile.

    Ref order:
      xc, yc, [mask,]
      w1_x, w1_y, b1,                      (first pre layer, split fan-in)
      (w, b) * n_pre_hidden,               (hidden pre layers, ReLU)
      w_pre_last, b_pre_last,              (last pre layer, no ReLU)
      w_post0, b_post0,                    (first post layer, ReLU)
      (w, b) * n_post_hidden,              (hidden post layers, ReLU)
      then:  w_out, b_out,            out_ref                (dim_lat is None)
         or: w_mu, b_mu, w_sg, b_sg,  mu_ref, sigma_ref      (latent path)
    """

    def kernel(*refs):
        idx = 0
        xc = refs[idx][...]; idx += 1          # (tb, N, dim_x)
        yc = refs[idx][...]; idx += 1          # (tb, N, dim_y)
        if has_mask:
            mask = refs[idx][...]; idx += 1    # (tb, N, 1) float32
        tb, n, dx = xc.shape
        dy = yc.shape[-1]
        x2 = xc.reshape(tb * n, dx)
        y2 = yc.reshape(tb * n, dy)

        # ---- pre MLP (first layer split over the [xc, yc] fan-in) ----------
        w1x = refs[idx][...]; idx += 1
        w1y = refs[idx][...]; idx += 1
        b1 = refs[idx][...]; idx += 1
        h = (jnp.dot(x2, w1x, preferred_element_type=jnp.float32)
             + jnp.dot(y2, w1y, preferred_element_type=jnp.float32)
             + b1)
        h = jnp.maximum(h, 0.0)
        for _ in range(n_pre_hidden):
            w = refs[idx][...]; idx += 1
            b = refs[idx][...]; idx += 1
            h = jnp.maximum(
                jnp.dot(h, w, preferred_element_type=jnp.float32) + b, 0.0)
        w = refs[idx][...]; idx += 1
        b = refs[idx][...]; idx += 1
        h = jnp.dot(h, w, preferred_element_type=jnp.float32) + b  # no ReLU

        # ---- pooling over the set (N) axis ----------------------------------
        h3 = h.reshape(tb, n, h.shape[-1])
        if has_mask:
            denom = jnp.sum(mask, axis=1) + 1e-5            # (tb, 1)
            pooled = jnp.sum(h3 * mask, axis=1) / denom     # (tb, dim_hid)
        else:
            pooled = jnp.mean(h3, axis=1)                   # (tb, dim_hid)

        # ---- post MLP --------------------------------------------------------
        w = refs[idx][...]; idx += 1
        b = refs[idx][...]; idx += 1
        g = jnp.maximum(
            jnp.dot(pooled, w, preferred_element_type=jnp.float32) + b, 0.0)
        for _ in range(n_post_hidden):
            w = refs[idx][...]; idx += 1
            b = refs[idx][...]; idx += 1
            g = jnp.maximum(
                jnp.dot(g, w, preferred_element_type=jnp.float32) + b, 0.0)

        if use_lat:
            w_mu = refs[idx][...]; idx += 1
            b_mu = refs[idx][...]; idx += 1
            w_sg = refs[idx][...]; idx += 1
            b_sg = refs[idx][...]; idx += 1
            mu = jnp.dot(g, w_mu, preferred_element_type=jnp.float32) + b_mu
            raw = jnp.dot(g, w_sg, preferred_element_type=jnp.float32) + b_sg
            sigma = 0.1 + 0.9 * (1.0 / (1.0 + jnp.exp(-raw)))
            mu_ref = refs[idx]; idx += 1
            sg_ref = refs[idx]; idx += 1
            mu_ref[...] = mu.astype(mu_ref.dtype)
            sg_ref[...] = sigma.astype(sg_ref.dtype)
        else:
            w = refs[idx][...]; idx += 1
            b = refs[idx][...]; idx += 1
            out = jnp.dot(g, w, preferred_element_type=jnp.float32) + b
            out_ref = refs[idx]; idx += 1
            out_ref[...] = out.astype(out_ref.dtype)

    return kernel


def init_encoder_params(key, dim_x=1, dim_y=1, dim_hid=128, dim_lat=None,
                        pre_depth=4, post_depth=2):
    """PyTorch-Linear-style init. Weights stored as (in, out); biases (1, out)."""
    assert pre_depth >= 2 and post_depth >= 2
    use_lat = dim_lat is not None

    def linear(k, fan_in, fan_out):
        bound = 1.0 / math.sqrt(fan_in)
        kw, kb = jax.random.split(k)
        w = jax.random.uniform(kw, (fan_in, fan_out), jnp.float32, -bound, bound)
        b = jax.random.uniform(kb, (1, fan_out), jnp.float32, -bound, bound)
        return w, b

    keys = jax.random.split(key, pre_depth + post_depth)
    pre = []
    fan_in = dim_x + dim_y
    for i in range(pre_depth):
        pre.append(linear(keys[i], fan_in, dim_hid))
        fan_in = dim_hid
    post = []
    dim_out_post = 2 * dim_lat if use_lat else dim_hid
    for i in range(post_depth):
        fo = dim_out_post if i == post_depth - 1 else dim_hid
        post.append(linear(keys[pre_depth + i], dim_hid, fo))
    return {"pre": pre, "post": post}


def _choose_tile_b(B, N, max_rows=2048):
    """Largest divisor of B with tile_b*N <= max_rows.

    The pooled output block is (tile_b, dim_out); keep tile_b a multiple of 8
    or equal to B so the (8, 128) block-shape constraint is satisfied.
    """
    candidates = [d for d in range(1, B + 1)
                  if B % d == 0 and (d % 8 == 0 or d == B)]
    fitting = [d for d in candidates if d * N <= max_rows]
    return max(fitting) if fitting else min(candidates)


def pooling_encoder_forward(params, xc, yc, mask=None, *, dim_lat=None,
                            tile_b=None, max_rows_per_step=2048):
    """Fused Pallas forward of PoolingEncoder.

    Returns net_post(pooled) if dim_lat is None, else (mu, sigma) of the
    Normal the PyTorch module would build.
    """
    assert xc.ndim == 3 and yc.ndim == 3
    B, N, dim_x = xc.shape
    dim_y = yc.shape[-1]
    use_lat = dim_lat is not None
    has_mask = mask is not None
    pre, post = params["pre"], params["post"]
    n_pre_hidden = len(pre) - 2
    n_post_hidden = len(post) - 2

    if tile_b is None:
        tile_b = _choose_tile_b(B, N, max_rows=max_rows_per_step)
    assert B % tile_b == 0, "tile_b must divide the batch dimension"

    inputs = [xc, yc]
    in_specs = [
        pl.BlockSpec((tile_b, N, dim_x), lambda i: (i, 0, 0)),
        pl.BlockSpec((tile_b, N, dim_y), lambda i: (i, 0, 0)),
    ]
    if has_mask:
        mask3 = mask.astype(jnp.float32).reshape(B, N, 1)
        inputs.append(mask3)
        in_specs.append(pl.BlockSpec((tile_b, N, 1), lambda i: (i, 0, 0)))

    def full_spec(shape):
        # Whole-array block, resident across all grid steps.
        return pl.BlockSpec(shape, lambda i: tuple(0 for _ in shape))

    # First pre layer: split fan-in so the kernel never needs cat([xc, yc]).
    w1, b1 = pre[0]
    w1x, w1y = w1[:dim_x], w1[dim_x:]
    for t in (w1x, w1y, b1):
        inputs.append(t)
        in_specs.append(full_spec(t.shape))
    # Remaining pre layers and all but the last post layer.
    for w, b in list(pre[1:]) + list(post[:-1]):
        inputs += [w, b]
        in_specs += [full_spec(w.shape), full_spec(b.shape)]

    w_last, b_last = post[-1]
    if use_lat:
        assert w_last.shape[1] == 2 * dim_lat
        w_mu, w_sg = w_last[:, :dim_lat], w_last[:, dim_lat:]
        b_mu, b_sg = b_last[:, :dim_lat], b_last[:, dim_lat:]
        for t in (w_mu, b_mu, w_sg, b_sg):
            inputs.append(t)
            in_specs.append(full_spec(t.shape))
        out_shape = (jax.ShapeDtypeStruct((B, dim_lat), jnp.float32),
                     jax.ShapeDtypeStruct((B, dim_lat), jnp.float32))
        out_specs = (pl.BlockSpec((tile_b, dim_lat), lambda i: (i, 0)),
                     pl.BlockSpec((tile_b, dim_lat), lambda i: (i, 0)))
    else:
        inputs += [w_last, b_last]
        in_specs += [full_spec(w_last.shape), full_spec(b_last.shape)]
        dim_out = w_last.shape[1]
        out_shape = jax.ShapeDtypeStruct((B, dim_out), jnp.float32)
        out_specs = pl.BlockSpec((tile_b, dim_out), lambda i: (i, 0))

    kernel = _make_encoder_kernel(n_pre_hidden, n_post_hidden, has_mask, use_lat)

    return pl.pallas_call(
        kernel,
        out_shape=out_shape,
        grid_spec=pltpu.PrefetchScalarGridSpec(
            num_scalar_prefetch=0,
            grid=(B // tile_b,),
            in_specs=in_specs,
            out_specs=out_specs,
        ),
        compiler_params=pltpu.CompilerParams(
            dimension_semantics=("parallel",),
            vmem_limit_bytes=32 * 1024 * 1024,
        ),
    )(*inputs)


def pooling_encoder_forward_ref(params, xc, yc, mask=None, *, dim_lat=None):
    """Pure-JAX reference matching the PyTorch module."""
    h = jnp.concatenate([xc, yc], axis=-1)
    pre, post = params["pre"], params["post"]
    for i, (w, b) in enumerate(pre):
        h = h @ w + b[0]
        if i < len(pre) - 1:
            h = jnp.maximum(h, 0.0)
    if mask is None:
        pooled = h.mean(axis=-2)
    else:
        m = mask.astype(jnp.float32)
        pooled = (h * m[..., None]).sum(-2) / (m.sum(-1, keepdims=True) + 1e-5)
    g = pooled
    for i, (w, b) in enumerate(post):
        g = g @ w + b[0]
        if i < len(post) - 1:
            g = jnp.maximum(g, 0.0)
    if dim_lat is not None:
        mu, sig = g[..., :dim_lat], g[..., dim_lat:]
        sigma = 0.1 + 0.9 * jax.nn.sigmoid(sig)
        return mu, sigma
    return g


if __name__ == "__main__":
    # Small shapes consistent with the module (dim_hid = 128 is the default
    # and keeps the feature axis lane dense).
    B, N = 4, 16
    dim_x, dim_y, dim_hid = 8, 8, 128
    pre_depth, post_depth = 4, 2

    key = jax.random.PRNGKey(0)
    k_par, k_par_lat, k_x, k_y, k_m = jax.random.split(key, 5)

    xc = jax.random.normal(k_x, (B, N, dim_x), jnp.float32)
    yc = jax.random.normal(k_y, (B, N, dim_y), jnp.float32)
    mask = (jax.random.uniform(k_m, (B, N)) > 0.3).astype(jnp.float32)

    # --- deterministic encoder (dim_lat=None), mask=None ---------------------
    params = init_encoder_params(k_par, dim_x=dim_x, dim_y=dim_y,
                                 dim_hid=dim_hid, dim_lat=None,
                                 pre_depth=pre_depth, post_depth=post_depth)
    out = pooling_encoder_forward(params, xc, yc, mask=None)
    jax.block_until_ready(out)
    out_ref = pooling_encoder_forward_ref(params, xc, yc, mask=None)
    assert jnp.allclose(out, out_ref, atol=1e-4, rtol=1e-4)

    # --- masked pooling -------------------------------------------------------
    out_m = pooling_encoder_forward(params, xc, yc, mask=mask)
    jax.block_until_ready(out_m)
    out_m_ref = pooling_encoder_forward_ref(params, xc, yc, mask=mask)
    assert jnp.allclose(out_m, out_m_ref, atol=1e-4, rtol=1e-4)

    # --- latent encoder (dim_lat=64): returns (mu, sigma) of Normal ----------
    dim_lat = 64
    params_lat = init_encoder_params(k_par_lat, dim_x=dim_x, dim_y=dim_y,
                                     dim_hid=dim_hid, dim_lat=dim_lat,
                                     pre_depth=pre_depth, post_depth=post_depth)
    mu, sigma = pooling_encoder_forward(params_lat, xc, yc, mask=None,
                                        dim_lat=dim_lat)
    jax.block_until_ready((mu, sigma))
    mu_ref, sigma_ref = pooling_encoder_forward_ref(params_lat, xc, yc,
                                                    mask=None, dim_lat=dim_lat)
    assert jnp.allclose(mu, mu_ref, atol=1e-4, rtol=1e-4)
    assert jnp.allclose(sigma, sigma_ref, atol=1e-4, rtol=1e-4)

    # TODO(synk): torch.distributions.Normal has no Pallas equivalent; the
    # latent path returns its parameters (mu, sigma) instead of the object.
    print("KERNEL_OK")
</pallas_src>

<mosaic_0001>
module attributes {stable_mosaic.version = 11 : i64} {
  func.func @kernel(%arg0: i32, %arg1: memref<4x16x8xf32, #tpu.memory_space<vmem>>, %arg2: memref<4x16x8xf32, #tpu.memory_space<vmem>>, %arg3: memref<8x128xf32, #tpu.memory_space<vmem>>, %arg4: memref<8x128xf32, #tpu.memory_space<vmem>>, %arg5: memref<1x128xf32, #tpu.memory_space<vmem>>, %arg6: memref<128x128xf32, #tpu.memory_space<vmem>>, %arg7: memref<1x128xf32, #tpu.memory_space<vmem>>, %arg8: memref<128x128xf32, #tpu.memory_space<vmem>>, %arg9: memref<1x128xf32, #tpu.memory_space<vmem>>, %arg10: memref<128x128xf32, #tpu.memory_space<vmem>>, %arg11: memref<1x128xf32, #tpu.memory_space<vmem>>, %arg12: memref<128x128xf32, #tpu.memory_space<vmem>>, %arg13: memref<1x128xf32, #tpu.memory_space<vmem>>, %arg14: memref<128x128xf32, #tpu.memory_space<vmem>>, %arg15: memref<1x128xf32, #tpu.memory_space<vmem>>, %arg16: memref<4x128xf32, #tpu.memory_space<vmem>>) attributes {dimension_semantics = [#tpu.dimension_semantics<parallel>], iteration_bounds = array<i64: 1>, scalar_prefetch = 0 : i64, scratch_operands = 0 : i64, tpu.core_type = #tpu.core_type<tc>, window_params = [{transform_indices = @transform_0, window_bounds = array<i64: 4, 16, 8>}, {transform_indices = @transform_1, window_bounds = array<i64: 4, 16, 8>}, {pipeline_mode = #tpu.pipeline_mode<synchronous>, transform_indices = @transform_2, window_bounds = array<i64: 8, 128>}, {pipeline_mode = #tpu.pipeline_mode<synchronous>, transform_indices = @transform_3, window_bounds = array<i64: 8, 128>}, {pipeline_mode = #tpu.pipeline_mode<synchronous>, transform_indices = @transform_4, window_bounds = array<i64: 1, 128>}, {pipeline_mode = #tpu.pipeline_mode<synchronous>, transform_indices = @transform_5, window_bounds = array<i64: 128, 128>}, {pipeline_mode = #tpu.pipeline_mode<synchronous>, transform_indices = @transform_6, window_bounds = array<i64: 1, 128>}, {pipeline_mode = #tpu.pipeline_mode<synchronous>, transform_indices = @transform_7, window_bounds = array<i64: 128, 128>}, {pipeline_mode = #tpu.pipeline_mode<synchronous>, transform_indices = @transform_8, window_bounds = array<i64: 1, 128>}, {pipeline_mode = #tpu.pipeline_mode<synchronous>, transform_indices = @transform_9, window_bounds = array<i64: 128, 128>}, {pipeline_mode = #tpu.pipeline_mode<synchronous>, transform_indices = @transform_10, window_bounds = array<i64: 1, 128>}, {pipeline_mode = #tpu.pipeline_mode<synchronous>, transform_indices = @transform_11, window_bounds = array<i64: 128, 128>}, {pipeline_mode = #tpu.pipeline_mode<synchronous>, transform_indices = @transform_12, window_bounds = array<i64: 1, 128>}, {pipeline_mode = #tpu.pipeline_mode<synchronous>, transform_indices = @transform_13, window_bounds = array<i64: 128, 128>}, {pipeline_mode = #tpu.pipeline_mode<synchronous>, transform_indices = @transform_14, window_bounds = array<i64: 1, 128>}, {transform_indices = @transform_15, window_bounds = array<i64: 4, 128>}]} {
    %c0 = arith.constant 0 : index
    %c0_0 = arith.constant 0 : index
    %c0_1 = arith.constant 0 : index
    %0 = vector.load %arg1[%c0, %c0_0, %c0_1] : memref<4x16x8xf32, #tpu.memory_space<vmem>>, vector<4x16x8xf32>
    %c0_2 = arith.constant 0 : index
    %c0_3 = arith.constant 0 : index
    %c0_4 = arith.constant 0 : index
    %1 = vector.load %arg2[%c0_2, %c0_3, %c0_4] : memref<4x16x8xf32, #tpu.memory_space<vmem>>, vector<4x16x8xf32>
    %2 = vector.shape_cast %0 : vector<4x16x8xf32> to vector<64x8xf32>
    %3 = vector.shape_cast %1 : vector<4x16x8xf32> to vector<64x8xf32>
    %c0_5 = arith.constant 0 : index
    %c0_6 = arith.constant 0 : index
    %4 = vector.load %arg3[%c0_5, %c0_6] : memref<8x128xf32, #tpu.memory_space<vmem>>, vector<8x128xf32>
    %c0_7 = arith.constant 0 : index
    %c0_8 = arith.constant 0 : index
    %5 = vector.load %arg4[%c0_7, %c0_8] : memref<8x128xf32, #tpu.memory_space<vmem>>, vector<8x128xf32>
    %c0_9 = arith.constant 0 : index
    %c0_10 = arith.constant 0 : index
    %6 = vector.load %arg5[%c0_9, %c0_10] : memref<1x128xf32, #tpu.memory_space<vmem>>, vector<1x128xf32>
    %cst = arith.constant dense<0.000000e+00> : vector<64x128xf32>
    %7 = tpu.matmul %2, %4, %cst {dimension_numbers = #tpu.dot_dimension_numbers<[1], [0], [0], [1], [0, 0, 1, 1], [], []>} : vector<64x8xf32>, vector<8x128xf32>, vector<64x128xf32> -> vector<64x128xf32>
    %cst_11 = arith.constant dense<0.000000e+00> : vector<64x128xf32>
    %8 = tpu.matmul %3, %5, %cst_11 {dimension_numbers = #tpu.dot_dimension_numbers<[1], [0], [0], [1], [0, 0, 1, 1], [], []>} : vector<64x8xf32>, vector<8x128xf32>, vector<64x128xf32> -> vector<64x128xf32>
    %9 = arith.addf %7, %8 : vector<64x128xf32>
    %10 = vector.broadcast %6 : vector<1x128xf32> to vector<64x128xf32>
    %11 = arith.addf %9, %10 : vector<64x128xf32>
    %cst_12 = arith.constant 0.000000e+00 : f32
    %12 = vector.broadcast %cst_12 : f32 to vector<64x128xf32>
    %13 = arith.maximumf %11, %12 : vector<64x128xf32>
    %c0_13 = arith.constant 0 : index
    %c0_14 = arith.constant 0 : index
    %14 = vector.load %arg6[%c0_13, %c0_14] : memref<128x128xf32, #tpu.memory_space<vmem>>, vector<128x128xf32>
    %c0_15 = arith.constant 0 : index
    %c0_16 = arith.constant 0 : index
    %15 = vector.load %arg7[%c0_15, %c0_16] : memref<1x128xf32, #tpu.memory_space<vmem>>, vector<1x128xf32>
    %cst_17 = arith.constant dense<0.000000e+00> : vector<64x128xf32>
    %16 = tpu.matmul %13, %14, %cst_17 {dimension_numbers = #tpu.dot_dimension_numbers<[1], [0], [0], [1], [0, 0, 1, 1], [], []>} : vector<64x128xf32>, vector<128x128xf32>, vector<64x128xf32> -> vector<64x128xf32>
    %17 = vector.broadcast %15 : vector<1x128xf32> to vector<64x128xf32>
    %18 = arith.addf %16, %17 : vector<64x128xf32>
    %cst_18 = arith.constant 0.000000e+00 : f32
    %19 = vector.broadcast %cst_18 : f32 to vector<64x128xf32>
    %20 = arith.maximumf %18, %19 : vector<64x128xf32>
    %c0_19 = arith.constant 0 : index
    %c0_20 = arith.constant 0 : index
    %21 = vector.load %arg8[%c0_19, %c0_20] : memref<128x128xf32, #tpu.memory_space<vmem>>, vector<128x128xf32>
    %c0_21 = arith.constant 0 : index
    %c0_22 = arith.constant 0 : index
    %22 = vector.load %arg9[%c0_21, %c0_22] : memref<1x128xf32, #tpu.memory_space<vmem>>, vector<1x128xf32>
    %cst_23 = arith.constant dense<0.000000e+00> : vector<64x128xf32>
    %23 = tpu.matmul %20, %21, %cst_23 {dimension_numbers = #tpu.dot_dimension_numbers<[1], [0], [0], [1], [0, 0, 1, 1], [], []>} : vector<64x128xf32>, vector<128x128xf32>, vector<64x128xf32> -> vector<64x128xf32>
    %24 = vector.broadcast %22 : vector<1x128xf32> to vector<64x128xf32>
    %25 = arith.addf %23, %24 : vector<64x128xf32>
    %cst_24 = arith.constant 0.000000e+00 : f32
    %26 = vector.broadcast %cst_24 : f32 to vector<64x128xf32>
    %27 = arith.maximumf %25, %26 : vector<64x128xf32>
    %c0_25 = arith.constant 0 : index
    %c0_26 = arith.constant 0 : index
    %28 = vector.load %arg10[%c0_25, %c0_26] : memref<128x128xf32, #tpu.memory_space<vmem>>, vector<128x128xf32>
    %c0_27 = arith.constant 0 : index
    %c0_28 = arith.constant 0 : index
    %29 = vector.load %arg11[%c0_27, %c0_28] : memref<1x128xf32, #tpu.memory_space<vmem>>, vector<1x128xf32>
    %cst_29 = arith.constant dense<0.000000e+00> : vector<64x128xf32>
    %30 = tpu.matmul %27, %28, %cst_29 {dimension_numbers = #tpu.dot_dimension_numbers<[1], [0], [0], [1], [0, 0, 1, 1], [], []>} : vector<64x128xf32>, vector<128x128xf32>, vector<64x128xf32> -> vector<64x128xf32>
    %31 = vector.broadcast %29 : vector<1x128xf32> to vector<64x128xf32>
    %32 = arith.addf %30, %31 : vector<64x128xf32>
    %33 = vector.shape_cast %32 : vector<64x128xf32> to vector<4x16x128xf32>
    %cst_30 = arith.constant dense<0.000000e+00> : vector<4x128xf32>
    %34 = vector.multi_reduction <add>, %33, %cst_30 [1] : vector<4x16x128xf32> to vector<4x128xf32>
    %cst_31 = arith.constant 1.600000e+01 : f32
    %35 = vector.broadcast %cst_31 : f32 to vector<4x128xf32>
    %36 = arith.divf %34, %35 : vector<4x128xf32>
    %c0_32 = arith.constant 0 : index
    %c0_33 = arith.constant 0 : index
    %37 = vector.load %arg12[%c0_32, %c0_33] : memref<128x128xf32, #tpu.memory_space<vmem>>, vector<128x128xf32>
    %c0_34 = arith.constant 0 : index
    %c0_35 = arith.constant 0 : index
    %38 = vector.load %arg13[%c0_34, %c0_35] : memref<1x128xf32, #tpu.memory_space<vmem>>, vector<1x128xf32>
    %cst_36 = arith.constant dense<0.000000e+00> : vector<4x128xf32>
    %39 = tpu.matmul %36, %37, %cst_36 {dimension_numbers = #tpu.dot_dimension_numbers<[1], [0], [0], [1], [0, 0, 1, 1], [], []>} : vector<4x128xf32>, vector<128x128xf32>, vector<4x128xf32> -> vector<4x128xf32>
    %40 = vector.broadcast %38 : vector<1x128xf32> to vector<4x128xf32>
    %41 = arith.addf %39, %40 : vector<4x128xf32>
    %cst_37 = arith.constant 0.000000e+00 : f32
    %42 = vector.broadcast %cst_37 : f32 to vector<4x128xf32>
    %43 = arith.maximumf %41, %42 : vector<4x128xf32>
    %c0_38 = arith.constant 0 : index
    %c0_39 = arith.constant 0 : index
    %44 = vector.load %arg14[%c0_38, %c0_39] : memref<128x128xf32, #tpu.memory_space<vmem>>, vector<128x128xf32>
    %c0_40 = arith.constant 0 : index
    %c0_41 = arith.constant 0 : index
    %45 = vector.load %arg15[%c0_40, %c0_41] : memref<1x128xf32, #tpu.memory_space<vmem>>, vector<1x128xf32>
    %cst_42 = arith.constant dense<0.000000e+00> : vector<4x128xf32>
    %46 = tpu.matmul %43, %44, %cst_42 {dimension_numbers = #tpu.dot_dimension_numbers<[1], [0], [0], [1], [0, 0, 1, 1], [], []>} : vector<4x128xf32>, vector<128x128xf32>, vector<4x128xf32> -> vector<4x128xf32>
    %47 = vector.broadcast %45 : vector<1x128xf32> to vector<4x128xf32>
    %48 = arith.addf %46, %47 : vector<4x128xf32>
    %c0_43 = arith.constant 0 : index
    %c0_44 = arith.constant 0 : index
    %49 = vector.load %arg16[%c0_43, %c0_44] : memref<4x128xf32, #tpu.memory_space<vmem>>, vector<4x128xf32>
    tpu.vector_store %arg16[%c0_43, %c0_44], %48 {strides = array<i32>} : memref<4x128xf32, #tpu.memory_space<vmem>>, vector<4x128xf32>,
    return
  }
  func.func @transform_0(%arg0: i32) -> (i32, i32, i32) {
    %c0_i32 = arith.constant 0 : i32
    %c0_i32_0 = arith.constant 0 : i32
    %c0_i32_1 = arith.constant 0 : i32
    return %arg0, %c0_i32, %c0_i32_0 : i32, i32, i32
  }
  func.func @transform_1(%arg0: i32) -> (i32, i32, i32) {
    %c0_i32 = arith.constant 0 : i32
    %c0_i32_0 = arith.constant 0 : i32
    %c0_i32_1 = arith.constant 0 : i32
    return %arg0, %c0_i32, %c0_i32_0 : i32, i32, i32
  }
  func.func @transform_2(%arg0: i32) -> (i32, i32) {
    %c0_i32 = arith.constant 0 : i32
    %c0_i32_0 = arith.constant 0 : i32
    %c0_i32_1 = arith.constant 0 : i32
    return %c0_i32, %c0_i32_0 : i32, i32
  }
  func.func @transform_3(%arg0: i32) -> (i32, i32) {
    %c0_i32 = arith.constant 0 : i32
    %c0_i32_0 = arith.constant 0 : i32
    %c0_i32_1 = arith.constant 0 : i32
    return %c0_i32, %c0_i32_0 : i32, i32
  }
  func.func @transform_4(%arg0: i32) -> (i32, i32) {
    %c0_i32 = arith.constant 0 : i32
    %c0_i32_0 = arith.constant 0 : i32
    %c0_i32_1 = arith.constant 0 : i32
    return %c0_i32, %c0_i32_0 : i32, i32
  }
  func.func @transform_5(%arg0: i32) -> (i32, i32) {
    %c0_i32 = arith.constant 0 : i32
    %c0_i32_0 = arith.constant 0 : i32
    %c0_i32_1 = arith.constant 0 : i32
    return %c0_i32, %c0_i32_0 : i32, i32
  }
  func.func @transform_6(%arg0: i32) -> (i32, i32) {
    %c0_i32 = arith.constant 0 : i32
    %c0_i32_0 = arith.constant 0 : i32
    %c0_i32_1 = arith.constant 0 : i32
    return %c0_i32, %c0_i32_0 : i32, i32
  }
  func.func @transform_7(%arg0: i32) -> (i32, i32) {
    %c0_i32 = arith.constant 0 : i32
    %c0_i32_0 = arith.constant 0 : i32
    %c0_i32_1 = arith.constant 0 : i32
    return %c0_i32, %c0_i32_0 : i32, i32
  }
  func.func @transform_8(%arg0: i32) -> (i32, i32) {
    %c0_i32 = arith.constant 0 : i32
    %c0_i32_0 = arith.constant 0 : i32
    %c0_i32_1 = arith.constant 0 : i32
    return %c0_i32, %c0_i32_0 : i32, i32
  }
  func.func @transform_9(%arg0: i32) -> (i32, i32) {
    %c0_i32 = arith.constant 0 : i32
    %c0_i32_0 = arith.constant 0 : i32
    %c0_i32_1 = arith.constant 0 : i32
    return %c0_i32, %c0_i32_0 : i32, i32
  }
  func.func @transform_10(%arg0: i32) -> (i32, i32) {
    %c0_i32 = arith.constant 0 : i32
    %c0_i32_0 = arith.constant 0 : i32
    %c0_i32_1 = arith.constant 0 : i32
    return %c0_i32, %c0_i32_0 : i32, i32
  }
  func.func @transform_11(%arg0: i32) -> (i32, i32) {
    %c0_i32 = arith.constant 0 : i32
    %c0_i32_0 = arith.constant 0 : i32
    %c0_i32_1 = arith.constant 0 : i32
    return %c0_i32, %c0_i32_0 : i32, i32
  }
  func.func @transform_12(%arg0: i32) -> (i32, i32) {
    %c0_i32 = arith.constant 0 : i32
    %c0_i32_0 = arith.constant 0 : i32
    %c0_i32_1 = arith.constant 0 : i32
    return %c0_i32, %c0_i32_0 : i32, i32
  }
  func.func @transform_13(%arg0: i32) -> (i32, i32) {
    %c0_i32 = arith.constant 0 : i32
    %c0_i32_0 = arith.constant 0 : i32
    %c0_i32_1 = arith.constant 0 : i32
    return %c0_i32, %c0_i32_0 : i32, i32
  }
  func.func @transform_14(%arg0: i32) -> (i32, i32) {
    %c0_i32 = arith.constant 0 : i32
    %c0_i32_0 = arith.constant 0 : i32
    %c0_i32_1 = arith.constant 0 : i32
    return %c0_i32, %c0_i32_0 : i32, i32
  }
  func.func @transform_15(%arg0: i32) -> (i32, i32) {
    %c0_i32 = arith.constant 0 : i32
    %c0_i32_0 = arith.constant 0 : i32
    return %arg0, %c0_i32 : i32, i32
  }
}

</mosaic_0001>

<llo_original>
// kernel: tpu_custom_call.1
$region0: #{tpu_custom_call.1}
  #allocation0 [shape = 'u32[]', space=smem, size = 0x4, offset = 0x4, fixed_abs, tag = 'smem constant byte address 0x4 - core index']
  #allocation1 [shape = 'u32[72,128]{1,0:T(1,128)}', space=vmem, size = 0x9000, scoped, tag = 'internal scratch']
  %s0 = inlined_call_operand.vmem [shape: f32[4,16,8], index: 0, kind: input, shape index: {}]
  %s1 = inlined_call_operand.vmem [shape: f32[4,16,8], index: 1, kind: input, shape index: {}]
  %s2 = inlined_call_operand.vmem [shape: f32[8,128], index: 2, kind: input, shape index: {}]
  %s3 = inlined_call_operand.vmem [shape: f32[8,128], index: 3, kind: input, shape index: {}]
  %s4 = inlined_call_operand.vmem [shape: f32[1,128], index: 4, kind: input, shape index: {}]
  %s5 = inlined_call_operand.vmem [shape: f32[128,128], index: 5, kind: input, shape index: {}]
  %s6 = inlined_call_operand.vmem [shape: f32[1,128], index: 6, kind: input, shape index: {}]
  %s7 = inlined_call_operand.hbm [shape: f32[128,128], index: 7, kind: input, shape index: {}]
  %s8 = inlined_call_operand.vmem [shape: f32[1,128], index: 8, kind: input, shape index: {}]
  %s9 = inlined_call_operand.hbm [shape: f32[128,128], index: 9, kind: input, shape index: {}]
  %s10 = inlined_call_operand.vmem [shape: f32[1,128], index: 10, kind: input, shape index: {}]
  %s11 = inlined_call_operand.hbm [shape: f32[128,128], index: 11, kind: input, shape index: {}]
  %s12 = inlined_call_operand.vmem [shape: f32[1,128], index: 12, kind: input, shape index: {}]
  %s13 = inlined_call_operand.hbm [shape: f32[128,128], index: 13, kind: input, shape index: {}]
  %s14 = inlined_call_operand.vmem [shape: f32[1,128], index: 14, kind: input, shape index: {}]
  %s15 = inlined_call_operand.hbm [shape: f32[4,128], index: 15, kind: output, shape index: {}]
  %s16 = sld [smem:[#allocation0]]
  $region86: #{tpu_custom_call.1} parent=0
    _
  %s18 = ssub.s32 1, %s16
  %s19 = scalar_select 0, %s18, %s16
  $region1: #{tpu_custom_call.1} parent=0
    #allocation2 [shape = 'u8[65536]{0}', space=vmem, size = 0x10000, scoped, tag = 'input window, operand 7, single buffered']
    #allocation3 [shape = 's32[1]{0}', space=sflag, size = 0x4, scoped, tag = 'scoped memory for tpu_custom_call.1']
    #allocation4 [shape = 's32[1]{0}', space=sflag, size = 0x4, scoped, tag = 'scoped memory for tpu_custom_call.1']
    #allocation5 [shape = 'u8[65536]{0}', space=vmem, size = 0x10000, scoped, tag = 'input window, operand 9, single buffered']
    #allocation6 [shape = 's32[1]{0}', space=sflag, size = 0x4, scoped, tag = 'scoped memory for tpu_custom_call.1']
    #allocation7 [shape = 'u8[65536]{0}', space=vmem, size = 0x10000, scoped, tag = 'input window, operand 11, single buffered']
    #allocation8 [shape = 'u8[65536]{0}', space=vmem, size = 0x10000, scoped, tag = 'input window, operand 13, single buffered']
    #allocation9 [shape = 's32[1]{0}', space=sflag, size = 0x4, scoped, tag = 'scoped memory for tpu_custom_call.1']
    #allocation10 [shape = 'u8[2048]{0}', space=vmem, size = 0x800, scoped, tag = 'output window, operand 0, single buffered']
    %20 = vsyncpa [#allocation3], 0
    %21 = vsyncpa [#allocation6], 0
    %22 = vsyncpa [#allocation9], 0
    %23 = vsyncpa [#allocation4], 0
    // Predicated region
    $region2: #{tpu_custom_call.1} parent=1 // pred_check
      _
    $region3: #{tpu_custom_call.1} parent=1 // pred_check_branch
      %25 = sbr.rel (0) target = $region5
    $region4: #{tpu_custom_call.1} parent=1 // pred_region
      _
    $region5: #{tpu_custom_call.1} parent=1 // pred_fallthru
      _
    // Predicated region
    $region6: #{tpu_custom_call.1} parent=1 // pred_check
      _
    $region7: #{tpu_custom_call.1} parent=1 // pred_check_branch
      %27 = sbr.rel (0) target = $region9
    $region8: #{tpu_custom_call.1} parent=1 // pred_region
      _
    $region9: #{tpu_custom_call.1} parent=1 // pred_fallthru
      _
    // Predicated region
    $region10: #{tpu_custom_call.1} parent=1 // pred_check
      _
    $region11: #{tpu_custom_call.1} parent=1 // pred_check_branch
      %29 = sbr.rel (0) target = $region13
    $region12: #{tpu_custom_call.1} parent=1 // pred_region
      _
    $region13: #{tpu_custom_call.1} parent=1 // pred_fallthru
      _
    // Predicated region
    $region14: #{tpu_custom_call.1} parent=1 // pred_check
      _
    $region15: #{tpu_custom_call.1} parent=1 // pred_check_branch
      %31 = sbr.rel (0) target = $region17
    $region16: #{tpu_custom_call.1} parent=1 // pred_region
      _
    $region17: #{tpu_custom_call.1} parent=1 // pred_fallthru
      _
    // Predicated region
    $region18: #{tpu_custom_call.1} parent=1 // pred_check
      _
    $region19: #{tpu_custom_call.1} parent=1 // pred_check_branch
      %33 = sbr.rel (0) target = $region21
    $region20: #{tpu_custom_call.1} parent=1 // pred_region
      _
    $region21: #{tpu_custom_call.1} parent=1 // pred_fallthru
      _
    // Predicated region
    $region22: #{tpu_custom_call.1} parent=1 // pred_check
      _
    $region23: #{tpu_custom_call.1} parent=1 // pred_check_branch
      %35 = sbr.rel (0) target = $region25
    $region24: #{tpu_custom_call.1} parent=1 // pred_region
      _
    $region25: #{tpu_custom_call.1} parent=1 // pred_fallthru
      _
    // Predicated region
    $region26: #{tpu_custom_call.1} parent=1 // pred_check
      _
    $region27: #{tpu_custom_call.1} parent=1 // pred_check_branch
      %37 = sbr.rel (0) target = $region29
    $region28: #{tpu_custom_call.1} parent=1 // pred_region
      _
    $region29: #{tpu_custom_call.1} parent=1 // pred_fallthru
      _
    // Predicated region
    $region30: #{tpu_custom_call.1} parent=1 // pred_check
      _
    $region31: #{tpu_custom_call.1} parent=1 // pred_check_branch
      %39 = sbr.rel (0) target = $region33
    $region32: #{tpu_custom_call.1} parent=1 // pred_region
      %41 = vsyncadd [#allocation3], 0
      %s42 = sshll.u32 %s7, 4
      %s43 = int_to_ptr.hbm [resolvable:$true] %s42
      %s44 = sshll.u32 [#allocation2], 4
      %s45 = int_to_ptr.vmem [resolvable:$true] %s44
      %50 = dma.hbm_to_vmem [thread:$0]  %s43, 2048, %s45, [#allocation3], 128, 128, 8
    $region33: #{tpu_custom_call.1} parent=1 // pred_fallthru
      _
    // Predicated region
    $region34: #{tpu_custom_call.1} parent=1 // pred_check
      _
    $region35: #{tpu_custom_call.1} parent=1 // pred_check_branch
      %52 = sbr.rel (0) target = $region37
    $region36: #{tpu_custom_call.1} parent=1 // pred_region
      _
    $region37: #{tpu_custom_call.1} parent=1 // pred_fallthru
      _
    // Predicated region
    $region38: #{tpu_custom_call.1} parent=1 // pred_check
      _
    $region39: #{tpu_custom_call.1} parent=1 // pred_check_branch
      %54 = sbr.rel (0) target = $region41
    $region40: #{tpu_custom_call.1} parent=1 // pred_region
      %56 = vsyncadd [#allocation6], 0
      %s57 = sshll.u32 %s9, 4
      %s58 = int_to_ptr.hbm [resolvable:$true] %s57
      %s59 = sshll.u32 [#allocation5], 4
      %s60 = int_to_ptr.vmem [resolvable:$true] %s59
      %65 = dma.hbm_to_vmem [thread:$0]  %s58, 2048, %s60, [#allocation6], 128, 128, 8
    $region41: #{tpu_custom_call.1} parent=1 // pred_fallthru
      _
    // Predicated region
    $region42: #{tpu_custom_call.1} parent=1 // pred_check
      _
    $region43: #{tpu_custom_call.1} parent=1 // pred_check_branch
      %67 = sbr.rel (0) target = $region45
    $region44: #{tpu_custom_call.1} parent=1 // pred_region
      _
    $region45: #{tpu_custom_call.1} parent=1 // pred_fallthru
      _
    // Predicated region
    $region46: #{tpu_custom_call.1} parent=1 // pred_check
      _
    $region47: #{tpu_custom_call.1} parent=1 // pred_check_branch
      %69 = sbr.rel (0) target = $region49
    $region48: #{tpu_custom_call.1} parent=1 // pred_region
      %71 = vsyncadd [#allocation6], 0
      %s72 = sshll.u32 %s11, 4
      %s73 = int_to_ptr.hbm [resolvable:$true] %s72
      %s74 = sshll.u32 [#allocation7], 4
      %s75 = int_to_ptr.vmem [resolvable:$true] %s74
      %80 = dma.hbm_to_vmem [thread:$0]  %s73, 2048, %s75, [#allocation6], 128, 128, 8
    $region49: #{tpu_custom_call.1} parent=1 // pred_fallthru
      _
    // Predicated region
    $region50: #{tpu_custom_call.1} parent=1 // pred_check
      _
    $region51: #{tpu_custom_call.1} parent=1 // pred_check_branch
      %82 = sbr.rel (0) target = $region53
    $region52: #{tpu_custom_call.1} parent=1 // pred_region
      _
    $region53: #{tpu_custom_call.1} parent=1 // pred_fallthru
      _
    // Predicated region
    $region54: #{tpu_custom_call.1} parent=1 // pred_check
      _
    $region55: #{tpu_custom_call.1} parent=1 // pred_check_branch
      %84 = sbr.rel (0) target = $region57
    $region56: #{tpu_custom_call.1} parent=1 // pred_region
      %86 = vsyncadd [#allocation9], 0
      %s87 = sshll.u32 %s13, 4
      %s88 = int_to_ptr.hbm [resolvable:$true] %s87
      %s89 = sshll.u32 [#allocation8], 4
      %s90 = int_to_ptr.vmem [resolvable:$true] %s89
      %95 = dma.hbm_to_vmem [thread:$0]  %s88, 2048, %s90, [#allocation9], 128, 128, 8
    $region57: #{tpu_custom_call.1} parent=1 // pred_fallthru
      _
    // Predicated region
    $region58: #{tpu_custom_call.1} parent=1 // pred_check
      _
    $region59: #{tpu_custom_call.1} parent=1 // pred_check_branch
      %97 = sbr.rel (0) target = $region61
    $region60: #{tpu_custom_call.1} parent=1 // pred_region
      _
    $region61: #{tpu_custom_call.1} parent=1 // pred_fallthru
      _
    // Predicated region
    $region62: #{tpu_custom_call.1} parent=1 // pred_check
      _
    $region63: #{tpu_custom_call.1} parent=1 // pred_check_branch
      %99 = sbr.rel (0) target = $region65
    $region64: #{tpu_custom_call.1} parent=1 // pred_region
      %101 = dma.done [#allocation3], 2048
    $region65: #{tpu_custom_call.1} parent=1 // pred_fallthru
      _
    // Predicated region
    $region66: #{tpu_custom_call.1} parent=1 // pred_check
      _
    $region67: #{tpu_custom_call.1} parent=1 // pred_check_branch
      %103 = sbr.rel (0) target = $region69
    $region68: #{tpu_custom_call.1} parent=1 // pred_region
      %105 = dma.done [#allocation6], 2048
    $region69: #{tpu_custom_call.1} parent=1 // pred_fallthru
      _
    // Predicated region
    $region70: #{tpu_custom_call.1} parent=1 // pred_check
      _
    $region71: #{tpu_custom_call.1} parent=1 // pred_check_branch
      %107 = sbr.rel (0) target = $region73
    $region72: #{tpu_custom_call.1} parent=1 // pred_region
      %109 = dma.done [#allocation6], 2048
    $region73: #{tpu_custom_call.1} parent=1 // pred_fallthru
      _
    // Predicated region
    $region74: #{tpu_custom_call.1} parent=1 // pred_check
      _
    $region75: #{tpu_custom_call.1} parent=1 // pred_check_branch
      %111 = sbr.rel (0) target = $region77
    $region76: #{tpu_custom_call.1} parent=1 // pred_region
      %113 = dma.done [#allocation9], 2048
    $region77: #{tpu_custom_call.1} parent=1 // pred_fallthru
      _
    %v114 = vld [vmem:[%s0] sm:$0xff]
    %v115 = vld [vmem:[%s0 + $0x8] sm:$0xff]
    %v116 = vld [vmem:[%s0 + $0x10] sm:$0xff]
    %v117 = vld [vmem:[%s0 + $0x18] sm:$0xff]
    %v118 = vld [vmem:[%s0 + $0x20] sm:$0xff]
    %v119 = vld [vmem:[%s0 + $0x28] sm:$0xff]
    %v120 = vld [vmem:[%s0 + $0x30] sm:$0xff]
    %v121 = vld [vmem:[%s0 + $0x38] sm:$0xff]
    %v122 = vld [vmem:[%s1] sm:$0xff]
    %v123 = vld [vmem:[%s1 + $0x8] sm:$0xff]
    %v124 = vld [vmem:[%s1 + $0x10] sm:$0xff]
    %v125 = vld [vmem:[%s1 + $0x18] sm:$0xff]
    %v126 = vld [vmem:[%s1 + $0x20] sm:$0xff]
    %v127 = vld [vmem:[%s1 + $0x28] sm:$0xff]
    %v128 = vld [vmem:[%s1 + $0x30] sm:$0xff]
    %v129 = vld [vmem:[%s1 + $0x38] sm:$0xff]
    %v130 = vld [vmem:[%s2] sm:$0xff]
    %v131 = vld [vmem:[%s3] sm:$0xff]
    %v132 = vld [vmem:[%s4] sm:$0x1]
    %vm133 = vcmask 64512
    %v135 = vsel %vm133, %v122, 0
    %v138 = vsel %vm133, %v123, 0
    %v141 = vsel %vm133, %v124, 0
    %v144 = vsel %vm133, %v125, 0
    %v147 = vsel %vm133, %v126, 0
    %v150 = vsel %vm133, %v127, 0
    %v153 = vsel %vm133, %v128, 0
    %v156 = vsel %vm133, %v129, 0
    %158 = vmatpush.msra.mxu0 0.0
    %159 = vmatpush.msra.mxu0 0.0
    %160 = vmatpush.msra.mxu0 0.0
    %161 = vmatpush.msra.mxu0 0.0
    %162 = vmatpush.msra.mxu0 0.0
    %163 = vmatpush.msra.mxu0 0.0
    %164 = vmatpush.msra.mxu0 0.0
    %165 = vmatpush.msra.mxu0 0.0
    %166 = vmatpush.msra.mxu0 0.0
    %167 = vmatpush.msra.mxu0 0.0
    %168 = vmatpush.msra.mxu0 0.0
    %169 = vmatpush.msra.mxu0 0.0
    %170 = vmatpush.msra.mxu0 0.0
    %171 = vmatpush.msra.mxu0 0.0
    %172 = vmatpush.msra.mxu0 0.0
    %173 = vmatpush.msra.mxu0 %v131
    %174 = vmatmul.f32.gmra.mxu0 %v135
    %v175 = vpop.f32.mrf.mxu0
    %v176 = vadd.f32 0.0, %v175
    %177 = vmatmul.f32.gmra.mxu0 %v138
    %v178 = vpop.f32.mrf.mxu0
    %v179 = vadd.f32 0.0, %v178
    %180 = vmatmul.f32.gmra.mxu0 %v141
    %v181 = vpop.f32.mrf.mxu0
    %v182 = vadd.f32 0.0, %v181
    %183 = vmatmul.f32.gmra.mxu0 %v144
    %v184 = vpop.f32.mrf.mxu0
    %v185 = vadd.f32 0.0, %v184
    %186 = vmatmul.f32.gmra.mxu0 %v147
    %v187 = vpop.f32.mrf.mxu0
    %v188 = vadd.f32 0.0, %v187
    %189 = vmatmul.f32.gmra.mxu0 %v150
    %v190 = vpop.f32.mrf.mxu0
    %v191 = vadd.f32 0.0, %v190
    %192 = vmatmul.f32.gmra.mxu0 %v153
    %v193 = vpop.f32.mrf.mxu0
    %v194 = vadd.f32 0.0, %v193
    %195 = vmatmul.f32.gmra.mxu0 %v156
    %v196 = vpop.f32.mrf.mxu0
    %v197 = vadd.f32 0.0, %v196
    %198 = vdwg.mxu0
    %v200 = vsel %vm133, %v114, 0
    %v203 = vsel %vm133, %v115, 0
    %v206 = vsel %vm133, %v116, 0
    %v209 = vsel %vm133, %v117, 0
    %v212 = vsel %vm133, %v118, 0
    %v215 = vsel %vm133, %v119, 0
    %v218 = vsel %vm133, %v120, 0
    %v221 = vsel %vm133, %v121, 0
    %223 = vmatpush.msra.mxu0 0.0
    %224 = vmatpush.msra.mxu0 0.0
    %225 = vmatpush.msra.mxu0 0.0
    %226 = vmatpush.msra.mxu0 0.0
    %227 = vmatpush.msra.mxu0 0.0
    %228 = vmatpush.msra.mxu0 0.0
    %229 = vmatpush.msra.mxu0 0.0
    %230 = vmatpush.msra.mxu0 0.0
    %231 = vmatpush.msra.mxu0 0.0
    %232 = vmatpush.msra.mxu0 0.0
    %233 = vmatpush.msra.mxu0 0.0
    %234 = vmatpush.msra.mxu0 0.0
    %235 = vmatpush.msra.mxu0 0.0
    %236 = vmatpush.msra.mxu0 0.0
    %237 = vmatpush.msra.mxu0 0.0
    %238 = vmatpush.msra.mxu0 %v130
    %239 = vmatmul.f32.gmra.mxu0 %v200
    %v240 = vpop.f32.mrf.mxu0
    %v241 = vadd.f32 %v176, %v240
    %242 = vmatmul.f32.gmra.mxu0 %v203
    %v243 = vpop.f32.mrf.mxu0
    %v244 = vadd.f32 %v179, %v243
    %245 = vmatmul.f32.gmra.mxu0 %v206
    %v246 = vpop.f32.mrf.mxu0
    %v247 = vadd.f32 %v182, %v246
    %248 = vmatmul.f32.gmra.mxu0 %v209
    %v249 = vpop.f32.mrf.mxu0
    %v250 = vadd.f32 %v185, %v249
    %251 = vmatmul.f32.gmra.mxu0 %v212
    %v252 = vpop.f32.mrf.mxu0
    %v253 = vadd.f32 %v188, %v252
    %254 = vmatmul.f32.gmra.mxu0 %v215
    %v255 = vpop.f32.mrf.mxu0
    %v256 = vadd.f32 %v191, %v255
    %257 = vmatmul.f32.gmra.mxu0 %v218
    %v258 = vpop.f32.mrf.mxu0
    %v259 = vadd.f32 %v194, %v258
    %260 = vmatmul.f32.gmra.mxu0 %v221
    %v261 = vpop.f32.mrf.mxu0
    %v262 = vadd.f32 %v197, %v261
    %263 = vdwg.mxu0
    %v265 = vperm.slane %v132, 0
    %v267 = vadd.f32 %v241, %v265
    %v268 = vadd.f32 %v244, %v265
    %v269 = vadd.f32 %v247, %v265
    %v270 = vadd.f32 %v250, %v265
    %v271 = vadd.f32 %v253, %v265
    %v272 = vadd.f32 %v256, %v265
    %v273 = vadd.f32 %v259, %v265
    %v274 = vadd.f32 %v262, %v265
    %v275 = vmax.f32 %v267, 0.0
    %v276 = vmax.f32 %v268, 0.0
    %v277 = vmax.f32 %v269, 0.0
    %v278 = vmax.f32 %v270, 0.0
    %v279 = vmax.f32 %v271, 0.0
    %v280 = vmax.f32 %v272, 0.0
    %v281 = vmax.f32 %v273, 0.0
    %v282 = vmax.f32 %v274, 0.0
    %v283 = vld [vmem:[%s5] sm:$0xff]
    %v284 = vld [vmem:[%s5 + $0x8] sm:$0xff]
    %v285 = vld [vmem:[%s5 + $0x10] sm:$0xff]
    %v286 = vld [vmem:[%s5 + $0x18] sm:$0xff]
    %v287 = vld [vmem:[%s5 + $0x20] sm:$0xff]
    %v288 = vld [vmem:[%s5 + $0x28] sm:$0xff]
    %v289 = vld [vmem:[%s5 + $0x30] sm:$0xff]
    %v290 = vld [vmem:[%s5 + $0x38] sm:$0xff]
    %v291 = vld [vmem:[%s5 + $0x40] sm:$0xff]
    %v292 = vld [vmem:[%s5 + $0x48] sm:$0xff]
    %v293 = vld [vmem:[%s5 + $0x50] sm:$0xff]
    %v294 = vld [vmem:[%s5 + $0x58] sm:$0xff]
    %v295 = vld [vmem:[%s5 + $0x60] sm:$0xff]
    %v296 = vld [vmem:[%s5 + $0x68] sm:$0xff]
    %v297 = vld [vmem:[%s5 + $0x70] sm:$0xff]
    %v298 = vld [vmem:[%s5 + $0x78] sm:$0xff]
    %v299 = vld [vmem:[%s6] sm:$0x1]
    %v301 = vperm.slane %v299, 0
    %303 = vmatpush.msra.mxu0 %v298
    %304 = vmatpush.msra.mxu0 %v297
    %305 = vmatpush.msra.mxu0 %v296
    %306 = vmatpush.msra.mxu0 %v295
    %307 = vmatpush.msra.mxu0 %v294
    %308 = vmatpush.msra.mxu0 %v293
    %309 = vmatpush.msra.mxu0 %v292
    %310 = vmatpush.msra.mxu0 %v291
    %311 = vmatpush.msra.mxu0 %v290
    %312 = vmatpush.msra.mxu0 %v289
    %313 = vmatpush.msra.mxu0 %v288
    %314 = vmatpush.msra.mxu0 %v287
    %315 = vmatpush.msra.mxu0 %v286
    %316 = vmatpush.msra.mxu0 %v285
    %317 = vmatpush.msra.mxu0 %v284
    %318 = vmatpush.msra.mxu0 %v283
    %319 = vmatmul.f32.gmra.mxu0 %v275
    %v320 = vpop.f32.mrf.mxu0
    %v321 = vadd.f32 %v301, %v320
    %322 = vmatmul.f32.gmra.mxu0 %v276
    %v323 = vpop.f32.mrf.mxu0
    %v324 = vadd.f32 %v301, %v323
    %325 = vmatmul.f32.gmra.mxu0 %v277
    %v326 = vpop.f32.mrf.mxu0
    %v327 = vadd.f32 %v301, %v326
    %328 = vmatmul.f32.gmra.mxu0 %v278
    %v329 = vpop.f32.mrf.mxu0
    %v330 = vadd.f32 %v301, %v329
    %331 = vmatmul.f32.gmra.mxu0 %v279
    %v332 = vpop.f32.mrf.mxu0
    %v333 = vadd.f32 %v301, %v332
    %334 = vmatmul.f32.gmra.mxu0 %v280
    %v335 = vpop.f32.mrf.mxu0
    %v336 = vadd.f32 %v301, %v335
    %337 = vmatmul.f32.gmra.mxu0 %v281
    %v338 = vpop.f32.mrf.mxu0
    %v339 = vadd.f32 %v301, %v338
    %340 = vmatmul.f32.gmra.mxu0 %v282
    %v341 = vpop.f32.mrf.mxu0
    %v342 = vadd.f32 %v301, %v341
    %343 = vdwg.mxu0
    %v344 = vmax.f32 %v321, 0.0
    %v345 = vmax.f32 %v324, 0.0
    %v346 = vmax.f32 %v327, 0.0
    %v347 = vmax.f32 %v330, 0.0
    %v348 = vmax.f32 %v333, 0.0
    %v349 = vmax.f32 %v336, 0.0
    %v350 = vmax.f32 %v339, 0.0
    %v351 = vmax.f32 %v342, 0.0
    %v352 = vld [vmem:[#allocation2] sm:$0xff]
    %v353 = vld [vmem:[#allocation2 + $0x8] sm:$0xff]
    %v354 = vld [vmem:[#allocation2 + $0x10] sm:$0xff]
    %v355 = vld [vmem:[#allocation2 + $0x18] sm:$0xff]
    %v356 = vld [vmem:[#allocation2 + $0x20] sm:$0xff]
    %v357 = vld [vmem:[#allocation2 + $0x28] sm:$0xff]
    %v358 = vld [vmem:[#allocation2 + $0x30] sm:$0xff]
    %v359 = vld [vmem:[#allocation2 + $0x38] sm:$0xff]
    %v360 = vld [vmem:[#allocation2 + $0x40] sm:$0xff]
    %v361 = vld [vmem:[#allocation2 + $0x48] sm:$0xff]
    %v362 = vld [vmem:[#allocation2 + $0x50] sm:$0xff]
    %v363 = vld [vmem:[#allocation2 + $0x58] sm:$0xff]
    %v364 = vld [vmem:[#allocation2 + $0x60] sm:$0xff]
    %v365 = vld [vmem:[#allocation2 + $0x68] sm:$0xff]
    %v366 = vld [vmem:[#allocation2 + $0x70] sm:$0xff]
    %v367 = vld [vmem:[#allocation2 + $0x78] sm:$0xff]
    %v368 = vld [vmem:[%s8] sm:$0x1]
    %v370 = vperm.slane %v368, 0
    %372 = vmatpush.msra.mxu0 %v367
    %373 = vmatpush.msra.mxu0 %v366
    %374 = vmatpush.msra.mxu0 %v365
    %375 = vmatpush.msra.mxu0 %v364
    %376 = vmatpush.msra.mxu0 %v363
    %377 = vmatpush.msra.mxu0 %v362
    %378 = vmatpush.msra.mxu0 %v361
    %379 = vmatpush.msra.mxu0 %v360
    %380 = vmatpush.msra.mxu0 %v359
    %381 = vmatpush.msra.mxu0 %v358
    %382 = vmatpush.msra.mxu0 %v357
    %383 = vmatpush.msra.mxu0 %v356
    %384 = vmatpush.msra.mxu0 %v355
    %385 = vmatpush.msra.mxu0 %v354
    %386 = vmatpush.msra.mxu0 %v353
    %387 = vmatpush.msra.mxu0 %v352
    %388 = vmatmul.f32.gmra.mxu0 %v344
    %v389 = vpop.f32.mrf.mxu0
    %v390 = vadd.f32 %v370, %v389
    %391 = vmatmul.f32.gmra.mxu0 %v345
    %v392 = vpop.f32.mrf.mxu0
    %v393 = vadd.f32 %v370, %v392
    %394 = vmatmul.f32.gmra.mxu0 %v346
    %v395 = vpop.f32.mrf.mxu0
    %v396 = vadd.f32 %v370, %v395
    %397 = vmatmul.f32.gmra.mxu0 %v347
    %v398 = vpop.f32.mrf.mxu0
    %v399 = vadd.f32 %v370, %v398
    %400 = vmatmul.f32.gmra.mxu0 %v348
    %v401 = vpop.f32.mrf.mxu0
    %v402 = vadd.f32 %v370, %v401
    %403 = vmatmul.f32.gmra.mxu0 %v349
    %v404 = vpop.f32.mrf.mxu0
    %v405 = vadd.f32 %v370, %v404
    %406 = vmatmul.f32.gmra.mxu0 %v350
    %v407 = vpop.f32.mrf.mxu0
    %v408 = vadd.f32 %v370, %v407
    %409 = vmatmul.f32.gmra.mxu0 %v351
    %v410 = vpop.f32.mrf.mxu0
    %v411 = vadd.f32 %v370, %v410
    %412 = vdwg.mxu0
    %v413 = vmax.f32 %v390, 0.0
    %v414 = vmax.f32 %v393, 0.0
    %v415 = vmax.f32 %v396, 0.0
    %v416 = vmax.f32 %v399, 0.0
    %v417 = vmax.f32 %v402, 0.0
    %v418 = vmax.f32 %v405, 0.0
    %v419 = vmax.f32 %v408, 0.0
    %v420 = vmax.f32 %v411, 0.0
    %v421 = vld [vmem:[#allocation5] sm:$0xff]
    %v422 = vld [vmem:[#allocation5 + $0x8] sm:$0xff]
    %v423 = vld [vmem:[#allocation5 + $0x10] sm:$0xff]
    %v424 = vld [vmem:[#allocation5 + $0x18] sm:$0xff]
    %v425 = vld [vmem:[#allocation5 + $0x20] sm:$0xff]
    %v426 = vld [vmem:[#allocation5 + $0x28] sm:$0xff]
    %v427 = vld [vmem:[#allocation5 + $0x30] sm:$0xff]
    %v428 = vld [vmem:[#allocation5 + $0x38] sm:$0xff]
    %v429 = vld [vmem:[#allocation5 + $0x40] sm:$0xff]
    %v430 = vld [vmem:[#allocation5 + $0x48] sm:$0xff]
    %v431 = vld [vmem:[#allocation5 + $0x50] sm:$0xff]
    %v432 = vld [vmem:[#allocation5 + $0x58] sm:$0xff]
    %v433 = vld [vmem:[#allocation5 + $0x60] sm:$0xff]
    %v434 = vld [vmem:[#allocation5 + $0x68] sm:$0xff]
    %v435 = vld [vmem:[#allocation5 + $0x70] sm:$0xff]
    %v436 = vld [vmem:[#allocation5 + $0x78] sm:$0xff]
    %v437 = vld [vmem:[%s10] sm:$0x1]
    %v439 = vperm.slane %v437, 0
    %441 = vmatpush.msra.mxu0 %v436
    %442 = vmatpush.msra.mxu0 %v435
    %443 = vmatpush.msra.mxu0 %v434
    %444 = vmatpush.msra.mxu0 %v433
    %445 = vmatpush.msra.mxu0 %v432
    %446 = vmatpush.msra.mxu0 %v431
    %447 = vmatpush.msra.mxu0 %v430
    %448 = vmatpush.msra.mxu0 %v429
    %449 = vmatpush.msra.mxu0 %v428
    %450 = vmatpush.msra.mxu0 %v427
    %451 = vmatpush.msra.mxu0 %v426
    %452 = vmatpush.msra.mxu0 %v425
    %453 = vmatpush.msra.mxu0 %v424
    %454 = vmatpush.msra.mxu0 %v423
    %455 = vmatpush.msra.mxu0 %v422
    %456 = vmatpush.msra.mxu0 %v421
    %457 = vmatmul.f32.gmra.mxu0 %v413
    %v458 = vpop.f32.mrf.mxu0
    %v459 = vadd.f32 %v439, %v458
    %460 = vmatmul.f32.gmra.mxu0 %v414
    %v461 = vpop.f32.mrf.mxu0
    %v462 = vadd.f32 %v439, %v461
    %463 = vmatmul.f32.gmra.mxu0 %v415
    %v464 = vpop.f32.mrf.mxu0
    %v465 = vadd.f32 %v439, %v464
    %466 = vmatmul.f32.gmra.mxu0 %v416
    %v467 = vpop.f32.mrf.mxu0
    %v468 = vadd.f32 %v439, %v467
    %469 = vmatmul.f32.gmra.mxu0 %v417
    %v470 = vpop.f32.mrf.mxu0
    %v471 = vadd.f32 %v439, %v470
    %472 = vmatmul.f32.gmra.mxu0 %v418
    %v473 = vpop.f32.mrf.mxu0
    %v474 = vadd.f32 %v439, %v473
    %475 = vmatmul.f32.gmra.mxu0 %v419
    %v476 = vpop.f32.mrf.mxu0
    %v477 = vadd.f32 %v439, %v476
    %478 = vmatmul.f32.gmra.mxu0 %v420
    %v479 = vpop.f32.mrf.mxu0
    %v480 = vadd.f32 %v439, %v479
    %481 = vdwg.mxu0
    %v482 = vadd.f32 %v459, %v462
    %v483 = vrot.slane %v482, 4
    %v484 = vadd.f32 %v482, %v483
    %v485 = vrot.slane %v484, 2
    %v486 = vadd.f32 %v484, %v485
    %v487 = vrot.slane %v486, 1
    %v488 = vadd.f32 %v486, %v487
    %v489 = vadd.f32 %v465, %v468
    %v490 = vrot.slane %v489, 4
    %v491 = vadd.f32 %v489, %v490
    %v492 = vrot.slane %v491, 2
    %v493 = vadd.f32 %v491, %v492
    %v494 = vrot.slane %v493, 1
    %v495 = vadd.f32 %v493, %v494
    %v496 = vadd.f32 %v471, %v474
    %v497 = vrot.slane %v496, 4
    %v498 = vadd.f32 %v496, %v497
    %v499 = vrot.slane %v498, 2
    %v500 = vadd.f32 %v498, %v499
    %v501 = vrot.slane %v500, 1
    %v502 = vadd.f32 %v500, %v501
    %v503 = vadd.f32 %v477, %v480
    %v504 = vrot.slane %v503, 4
    %v505 = vadd.f32 %v503, %v504
    %v506 = vrot.slane %v505, 2
    %v507 = vadd.f32 %v505, %v506
    %v508 = vrot.slane %v507, 1
    %v509 = vadd.f32 %v507, %v508
    %v510 = vrcp.pop 16.0
    %v511 = vmul.f32 16.0, %v510
    %v512 = vsub.f32 1.0, %v511
    %v513 = vmul.f32 %v510, %v512
    %v514 = vadd.f32 %v510, %v513
    %vm515 = vweird.f32 %v510
    %v516 = vsel %vm515, %v510, %v514
    %v517 = vmul.f32 %v488, %v516
    %v518 = vmul.f32 %v495, %v516
    %v519 = vmul.f32 %v502, %v516
    %v520 = vmul.f32 %v509, %v516
    %v521 = vld [vmem:[#allocation7] sm:$0xff]
    %v522 = vld [vmem:[#allocation7 + $0x8] sm:$0xff]
    %v523 = vld [vmem:[#allocation7 + $0x10] sm:$0xff]
    %v524 = vld [vmem:[#allocation7 + $0x18] sm:$0xff]
    %v525 = vld [vmem:[#allocation7 + $0x20] sm:$0xff]
    %v526 = vld [vmem:[#allocation7 + $0x28] sm:$0xff]
    %v527 = vld [vmem:[#allocation7 + $0x30] sm:$0xff]
    %v528 = vld [vmem:[#allocation7 + $0x38] sm:$0xff]
    %v529 = vld [vmem:[#allocation7 + $0x40] sm:$0xff]
    %v530 = vld [vmem:[#allocation7 + $0x48] sm:$0xff]
    %v531 = vld [vmem:[#allocation7 + $0x50] sm:$0xff]
    %v532 = vld [vmem:[#allocation7 + $0x58] sm:$0xff]
    %v533 = vld [vmem:[#allocation7 + $0x60] sm:$0xff]
    %v534 = vld [vmem:[#allocation7 + $0x68] sm:$0xff]
    %v535 = vld [vmem:[#allocation7 + $0x70] sm:$0xff]
    %v536 = vld [vmem:[#allocation7 + $0x78] sm:$0xff]
    %v537 = vld [vmem:[%s12] sm:$0x1]
    %v539 = vperm.slane %v537, 0
    %vm545 = vcmask 1041409
    %v546 = vsel %vm545, %v518, %v517
    %vm547 = vcmask 1042434
    %v548 = vsel %vm547, %v519, %v546
    %vm549 = vcmask 1043459
    %v550 = vsel %vm549, %v520, %v548
    %552 = vmatpush.msra.mxu0 %v536
    %553 = vmatpush.msra.mxu0 %v535
    %554 = vmatpush.msra.mxu0 %v534
    %555 = vmatpush.msra.mxu0 %v533
    %556 = vmatpush.msra.mxu0 %v532
    %557 = vmatpush.msra.mxu0 %v531
    %558 = vmatpush.msra.mxu0 %v530
    %559 = vmatpush.msra.mxu0 %v529
    %560 = vmatpush.msra.mxu0 %v528
    %561 = vmatpush.msra.mxu0 %v527
    %562 = vmatpush.msra.mxu0 %v526
    %563 = vmatpush.msra.mxu0 %v525
    %564 = vmatpush.msra.mxu0 %v524
    %565 = vmatpush.msra.mxu0 %v523
    %566 = vmatpush.msra.mxu0 %v522
    %567 = vmatpush.msra.mxu0 %v521
    %568 = vmatmul.f32.gmra.mxu0 %v550
    %v569 = vpop.f32.mrf.mxu0
    %v570 = vadd.f32 %v539, %v569
    %571 = vdwg.mxu0
    %v572 = vmax.f32 %v570, 0.0
    %v573 = vld [vmem:[#allocation8] sm:$0xff]
    %v574 = vld [vmem:[#allocation8 + $0x8] sm:$0xff]
    %v575 = vld [vmem:[#allocation8 + $0x10] sm:$0xff]
    %v576 = vld [vmem:[#allocation8 + $0x18] sm:$0xff]
    %v577 = vld [vmem:[#allocation8 + $0x20] sm:$0xff]
    %v578 = vld [vmem:[#allocation8 + $0x28] sm:$0xff]
    %v579 = vld [vmem:[#allocation8 + $0x30] sm:$0xff]
    %v580 = vld [vmem:[#allocation8 + $0x38] sm:$0xff]
    %v581 = vld [vmem:[#allocation8 + $0x40] sm:$0xff]
    %v582 = vld [vmem:[#allocation8 + $0x48] sm:$0xff]
    %v583 = vld [vmem:[#allocation8 + $0x50] sm:$0xff]
    %v584 = vld [vmem:[#allocation8 + $0x58] sm:$0xff]
    %v585 = vld [vmem:[#allocation8 + $0x60] sm:$0xff]
    %v586 = vld [vmem:[#allocation8 + $0x68] sm:$0xff]
    %v587 = vld [vmem:[#allocation8 + $0x70] sm:$0xff]
    %v588 = vld [vmem:[#allocation8 + $0x78] sm:$0xff]
    %v589 = vld [vmem:[%s14] sm:$0x1]
    %v591 = vperm.slane %v589, 0
    %593 = vmatpush.msra.mxu0 %v588
    %594 = vmatpush.msra.mxu0 %v587
    %595 = vmatpush.msra.mxu0 %v586
    %596 = vmatpush.msra.mxu0 %v585
    %597 = vmatpush.msra.mxu0 %v584
    %598 = vmatpush.msra.mxu0 %v583
    %599 = vmatpush.msra.mxu0 %v582
    %600 = vmatpush.msra.mxu0 %v581
    %601 = vmatpush.msra.mxu0 %v580
    %602 = vmatpush.msra.mxu0 %v579
    %603 = vmatpush.msra.mxu0 %v578
    %604 = vmatpush.msra.mxu0 %v577
    %605 = vmatpush.msra.mxu0 %v576
    %606 = vmatpush.msra.mxu0 %v575
    %607 = vmatpush.msra.mxu0 %v574
    %608 = vmatpush.msra.mxu0 %v573
    %609 = vmatmul.f32.gmra.mxu0 %v572
    %v610 = vpop.f32.mrf.mxu0
    %v611 = vadd.f32 %v591, %v610
    %612 = vdwg.mxu0
    %613 = vst [vmem:[#allocation10] sm:$0xf] %v611
    // Predicated region
    $region78: #{tpu_custom_call.1} parent=1 // pred_check
      _
    $region79: #{tpu_custom_call.1} parent=1 // pred_check_branch
      %615 = sbr.rel (0) target = $region81
    $region80: #{tpu_custom_call.1} parent=1 // pred_region
      %617 = vsyncadd [#allocation4], 0
      %s619 = sshll.u32 [#allocation10], 4
      %s620 = int_to_ptr.vmem [resolvable:$true] %s619
      %s621 = sshll.u32 %s15, 4
      %s622 = int_to_ptr.hbm [resolvable:$true] %s621
      %624 = dma.vmem_to_hbm [thread:$0]  %s620, 64, %s622, [#allocation4]
    $region81: #{tpu_custom_call.1} parent=1 // pred_fallthru
      _
    // Predicated region
    $region82: #{tpu_custom_call.1} parent=1 // pred_check
      _
    $region83: #{tpu_custom_call.1} parent=1 // pred_check_branch
      %626 = sbr.rel (0) target = $region85
    $region84: #{tpu_custom_call.1} parent=1 // pred_region
      %628 = dma.done [#allocation4], 64
    $region85: #{tpu_custom_call.1} parent=1 // pred_fallthru
      _
    %629 = vsyncpa [#allocation3], 1
    %630 = vsyncpa [#allocation6], 1
    %631 = vsyncpa [#allocation9], 1
    %632 = vsyncpa [#allocation4], 1

</llo_original>
